<compile_context>
chip_gen: v7x
topology: tpu7x:2x2x1
jax: 0.10.0
libtpu: 0.0.40
codegen_flags: <defaults>
</compile_context>

<pallas_src>
import jax
import jax.numpy as jnp
from jax import lax
from jax.experimental import pallas as pl
from jax.experimental.pallas import tpu as pltpu


def attention_kernel(vip_ref, ids_ref, emb_ref, w1v_ref, w1s_ref, b1_ref,
                     w2_ref, b2_ref, w3_ref, out_ref):
    # vip_ref: (BB, V) f32   ids_ref: (BB, S) i32   emb_ref: (VOCAB, E) f32
    # w1v: (V, H1)  w1s: (E, H1)  b1: (1, H1)
    # w2:  (H1, H2)             b2: (1, H2)
    # w3:  (1, H2)              out_ref: (BB, E)
    BB, S = ids_ref.shape
    VOCAB, E = emb_ref.shape
    H1 = w1s_ref.shape[1]
    H2 = w2_ref.shape[1]

    # ---- In-kernel embedding gather: one-hot @ table on the MXU -----------
    # vocab is small (<= ~256), so the table is VMEM-resident and the gather
    # is a (BB*S, VOCAB) bf16 one-hot matmul; avoids the XLA gather + HBM
    # round trip of seq_emb entirely.
    ids = ids_ref[...]                                        # (BB, S) i32
    one_hot = (ids[:, :, None] ==
               lax.broadcasted_iota(jnp.int32, (BB, S, VOCAB), 2)
               ).astype(jnp.bfloat16)                         # (BB, S, VOCAB)
    one_hot2 = one_hot.reshape(BB * S, VOCAB)                 # leading-dim collapse
    emb_bf = emb_ref[...].astype(jnp.bfloat16)
    seq2 = jnp.dot(one_hot2, emb_bf,
                   preferred_element_type=jnp.float32)        # (BB*S, E) f32

    # ---- Linear 1 (+tanh) on the concatenated [vip, seq] features ---------
    # cat @ W1 == seq @ W1_seq + vip @ W1_vip (vip term broadcast over S);
    # b1 folded into the small vip term.
    vip_h = jnp.dot(vip_ref[...].astype(jnp.bfloat16),
                    w1v_ref[...].astype(jnp.bfloat16),
                    preferred_element_type=jnp.float32) + b1_ref[...]   # (BB, H1)
    seq_h = jnp.dot(seq2.astype(jnp.bfloat16),
                    w1s_ref[...].astype(jnp.bfloat16),
                    preferred_element_type=jnp.float32)       # (BB*S, H1)
    h1 = jnp.tanh(seq_h.reshape(BB, S, H1) + vip_h[:, None, :])   # (BB, S, H1)

    # ---- Linear 2 (+tanh) ---------------------------------------------------
    h2 = jnp.tanh(jnp.dot(h1.reshape(BB * S, H1).astype(jnp.bfloat16),
                          w2_ref[...].astype(jnp.bfloat16),
                          preferred_element_type=jnp.float32)
                  + b2_ref[...])                              # (BB*S, H2)

    # ---- Linear 3 -> per-position score; softmax over the sequence --------
    # (b3 omitted: adding a scalar before softmax is exactly a no-op.)
    score = jnp.sum(h2.reshape(BB, S, H2) * w3_ref[...],
                    axis=-1, keepdims=True)                   # (BB, S, 1)
    m = jnp.max(score, axis=1, keepdims=True)                 # (BB, 1, 1)
    p = jnp.exp(score - m)                                    # (BB, S, 1)
    denom = jnp.sum(p, axis=1, keepdims=True)                 # (BB, 1, 1)
    p = p * pl.reciprocal(denom, approx=True)                 # EUP slot (free)

    # ---- Weighted sum of seq_emb: att @ seq_emb -> (BB, E) -----------------
    out = jnp.sum(p * seq2.reshape(BB, S, E), axis=1)         # (BB, E)
    out_ref[...] = out.astype(out_ref.dtype)


def _pick_block_b(B, max_bb=1024):
    """Pick a batch tile BB (multiple of 8) and padded batch B_pad = steps*BB.

    * Single-TC chips (v5e/v6e): prefer the largest tile -> one step if it fits.
    * v7x: when more than one step is needed, keep the step count EVEN so the
      two TensorCores get balanced halves of the 'parallel' axis.
    """
    max_bb = max(8, (max_bb // 8) * 8)
    b8 = ((B + 7) // 8) * 8
    if b8 <= max_bb:
        return b8, b8                       # one tile, no grid tail
    steps = -(-B // max_bb)
    if steps > 1 and steps % 2 == 1:
        steps += 1                          # even step count for v7x's 2 TCs
    bb = ((-(-B // steps) + 7) // 8) * 8
    return bb, bb * steps


def attention_forward(vip_emb, seq_input, params, max_block_b=1024):
    """vip_emb: [B, V] f32, seq_input: [B, S] int -> [B, E] f32."""
    emb_table = params["embedding"]                      # [VOCAB, E] f32
    B, V = vip_emb.shape
    _, S = seq_input.shape
    VOCAB, E = emb_table.shape

    w1v, w1s, b1 = params["w1_vip"], params["w1_seq"], params["b1"]
    w2, b2 = params["w2"], params["b2"]
    w3 = params["w3"]
    H1 = w1s.shape[1]
    H2 = w2.shape[1]

    # TODO(synk): the in-kernel one-hot gather assumes a small vocabulary
    # (table VMEM-resident, vocab <= ~256); a large-vocab variant needs a
    # scalar-prefetch / manual-DMA row gather instead.

    BB, B_pad = _pick_block_b(B, max_block_b)
    seq_ids = seq_input.astype(jnp.int32)
    if B_pad != B:
        vip_emb = jnp.pad(vip_emb, ((0, B_pad - B), (0, 0)))
        seq_ids = jnp.pad(seq_ids, ((0, B_pad - B), (0, 0)))   # index 0 is valid

    const = lambda b: (0, 0)
    grid_spec = pltpu.PrefetchScalarGridSpec(
        num_scalar_prefetch=0,
        grid=(B_pad // BB,),
        in_specs=[
            pl.BlockSpec((BB, V), lambda b: (b, 0)),      # vip tile
            pl.BlockSpec((BB, S), lambda b: (b, 0)),      # seq ids tile (int32)
            pl.BlockSpec((VOCAB, E), const),              # embedding table: resident
            pl.BlockSpec((V, H1), const),                 # weights: resident
            pl.BlockSpec((E, H1), const),
            pl.BlockSpec((1, H1), const),
            pl.BlockSpec((H1, H2), const),
            pl.BlockSpec((1, H2), const),
            pl.BlockSpec((1, H2), const),
        ],
        out_specs=pl.BlockSpec((BB, E), lambda b: (b, 0)),
    )

    out = pl.pallas_call(
        attention_kernel,
        out_shape=jax.ShapeDtypeStruct((B_pad, E), jnp.float32),
        grid_spec=grid_spec,
        compiler_params=pltpu.CompilerParams(
            dimension_semantics=("parallel",),
            vmem_limit_bytes=32 * 1024 * 1024),
    )(vip_emb, seq_ids, emb_table, w1v, w1s, b1, w2, b2, w3)

    # torch .squeeze(): for B > 1 this is [B, E]. (B == 1 would squeeze to [E]
    # in torch; here we keep [1, E].)
    return out[:B]


def init_params(key, vocab_size, vip_size, num_inputs=64, hidden_units=(64, 32)):
    E = num_inputs
    H1, H2 = hidden_units
    ks = jax.random.split(key, 8)
    scale = 0.1
    params = {
        "embedding": jax.random.normal(ks[0], (vocab_size, E), jnp.float32) * scale,
        # Linear(V+E, H1) split into vip-part and seq-part, stored [in, out].
        "w1_vip": jax.random.normal(ks[1], (vip_size, H1), jnp.float32) * scale,
        "w1_seq": jax.random.normal(ks[2], (E, H1), jnp.float32) * scale,
        "b1": jax.random.normal(ks[3], (1, H1), jnp.float32) * scale,
        "w2": jax.random.normal(ks[4], (H1, H2), jnp.float32) * scale,
        "b2": jax.random.normal(ks[5], (1, H2), jnp.float32) * scale,
        # Linear(H2, 1): weight stored as (1, H2) row vector, bias as (1, 1).
        "w3": jax.random.normal(ks[6], (1, H2), jnp.float32) * scale,
        "b3": jax.random.normal(ks[7], (1, 1), jnp.float32) * scale,
    }
    return params


def reference_forward(vip_emb, seq_input, params):
    """Plain-JAX f32 reference matching the PyTorch forward (eval mode, incl. b3)."""
    seq_emb = jnp.take(params["embedding"], seq_input, axis=0)        # [B,S,E]
    B, S, E = seq_emb.shape
    vip_rep = jnp.broadcast_to(vip_emb[:, None, :], (B, S, vip_emb.shape[1]))
    cat = jnp.concatenate([vip_rep, seq_emb], axis=2)                 # [B,S,V+E]
    w1 = jnp.concatenate([params["w1_vip"], params["w1_seq"]], axis=0)
    h1 = jnp.tanh(cat @ w1 + params["b1"])
    h2 = jnp.tanh(h1 @ params["w2"] + params["b2"])
    score = h2 @ params["w3"].T + params["b3"]                        # [B,S,1]
    att = jax.nn.softmax(jnp.transpose(score, (0, 2, 1)), axis=2)     # [B,1,S]
    return jnp.squeeze(att @ seq_emb)                                 # [B,E]


if __name__ == "__main__":
    # Small shapes: batch=8, seq=8, vip_size=16, vocab=100, emb=64, hidden=(64,32)
    B, S, V = 8, 8, 16
    VOCAB, E = 100, 64

    key = jax.random.PRNGKey(0)
    kp, kv, ks = jax.random.split(key, 3)
    params = init_params(kp, VOCAB, V, num_inputs=E, hidden_units=(64, 32))

    vip_emb = jax.random.normal(kv, (B, V), jnp.float32)
    seq_input = jax.random.randint(ks, (B, S), 0, VOCAB, dtype=jnp.int32)

    out = attention_forward(vip_emb, seq_input, params)
    out = jax.block_until_ready(out)

    ref = reference_forward(vip_emb, seq_input, params)
    assert out.shape == (B, E), out.shape
    # Tolerance 2e-2: matmul operands are bf16 (f32 accumulation) and the
    # softmax normalizer uses the EUP approximate reciprocal; measured error
    # at these shapes/scales is ~1e-3. Dropping b3 before softmax is exact.
    assert jnp.allclose(out, ref, atol=2e-2, rtol=2e-2), \
        float(jnp.max(jnp.abs(out - ref)))

    # TODO(synk): Dropout is treated as identity (inference mode); training-mode
    # stochastic dropout is not reproduced.
    print("KERNEL_OK")
</pallas_src>

<mosaic_0001>
module attributes {stable_mosaic.version = 11 : i64} {
  func.func @attention_kernel(%arg0: i32, %arg1: memref<8x16xf32, #tpu.memory_space<vmem>>, %arg2: memref<8x8xi32, #tpu.memory_space<vmem>>, %arg3: memref<100x64xf32, #tpu.memory_space<vmem>>, %arg4: memref<16x64xf32, #tpu.memory_space<vmem>>, %arg5: memref<64x64xf32, #tpu.memory_space<vmem>>, %arg6: memref<1x64xf32, #tpu.memory_space<vmem>>, %arg7: memref<64x32xf32, #tpu.memory_space<vmem>>, %arg8: memref<1x32xf32, #tpu.memory_space<vmem>>, %arg9: memref<1x32xf32, #tpu.memory_space<vmem>>, %arg10: memref<8x64xf32, #tpu.memory_space<vmem>>) attributes {dimension_semantics = [#tpu.dimension_semantics<parallel>], iteration_bounds = array<i64: 1>, scalar_prefetch = 0 : i64, scratch_operands = 0 : i64, tpu.core_type = #tpu.core_type<tc>, window_params = [{transform_indices = @transform_0, window_bounds = array<i64: 8, 16>}, {transform_indices = @transform_1, window_bounds = array<i64: 8, 8>}, {pipeline_mode = #tpu.pipeline_mode<synchronous>, transform_indices = @transform_2, window_bounds = array<i64: 100, 64>}, {pipeline_mode = #tpu.pipeline_mode<synchronous>, transform_indices = @transform_3, window_bounds = array<i64: 16, 64>}, {pipeline_mode = #tpu.pipeline_mode<synchronous>, transform_indices = @transform_4, window_bounds = array<i64: 64, 64>}, {pipeline_mode = #tpu.pipeline_mode<synchronous>, transform_indices = @transform_5, window_bounds = array<i64: 1, 64>}, {pipeline_mode = #tpu.pipeline_mode<synchronous>, transform_indices = @transform_6, window_bounds = array<i64: 64, 32>}, {pipeline_mode = #tpu.pipeline_mode<synchronous>, transform_indices = @transform_7, window_bounds = array<i64: 1, 32>}, {pipeline_mode = #tpu.pipeline_mode<synchronous>, transform_indices = @transform_8, window_bounds = array<i64: 1, 32>}, {transform_indices = @transform_9, window_bounds = array<i64: 8, 64>}]} {
    %c0 = arith.constant 0 : index
    %c0_0 = arith.constant 0 : index
    %0 = vector.load %arg2[%c0, %c0_0] : memref<8x8xi32, #tpu.memory_space<vmem>>, vector<8x8xi32>
    %1 = vector.shape_cast %0 : vector<8x8xi32> to vector<8x8x1xi32>
    %2 = tpu.iota {dimensions = array<i32: 2>} : vector<8x8x100xi32>
    %3 = vector.broadcast %1 : vector<8x8x1xi32> to vector<8x8x100xi32>
    %4 = arith.cmpi eq, %3, %2 : vector<8x8x100xi32>
    %5 = arith.extui %4 : vector<8x8x100xi1> to vector<8x8x100xi32>
    %6 = arith.sitofp %5 : vector<8x8x100xi32> to vector<8x8x100xf32>
    %7 = arith.truncf %6 : vector<8x8x100xf32> to vector<8x8x100xbf16>
    %8 = vector.shape_cast %7 : vector<8x8x100xbf16> to vector<64x100xbf16>
    %c0_1 = arith.constant 0 : index
    %c0_2 = arith.constant 0 : index
    %9 = vector.load %arg3[%c0_1, %c0_2] : memref<100x64xf32, #tpu.memory_space<vmem>>, vector<100x64xf32>
    %10 = arith.truncf %9 : vector<100x64xf32> to vector<100x64xbf16>
    %cst = arith.constant dense<0.000000e+00> : vector<64x64xf32>
    %11 = tpu.matmul %8, %10, %cst {dimension_numbers = #tpu.dot_dimension_numbers<[1], [0], [0], [1], [0, 0, 1, 1], [], []>} : vector<64x100xbf16>, vector<100x64xbf16>, vector<64x64xf32> -> vector<64x64xf32>
    %c0_3 = arith.constant 0 : index
    %c0_4 = arith.constant 0 : index
    %12 = vector.load %arg1[%c0_3, %c0_4] : memref<8x16xf32, #tpu.memory_space<vmem>>, vector<8x16xf32>
    %13 = arith.truncf %12 : vector<8x16xf32> to vector<8x16xbf16>
    %c0_5 = arith.constant 0 : index
    %c0_6 = arith.constant 0 : index
    %14 = vector.load %arg4[%c0_5, %c0_6] : memref<16x64xf32, #tpu.memory_space<vmem>>, vector<16x64xf32>
    %15 = arith.truncf %14 : vector<16x64xf32> to vector<16x64xbf16>
    %cst_7 = arith.constant dense<0.000000e+00> : vector<8x64xf32>
    %16 = tpu.matmul %13, %15, %cst_7 {dimension_numbers = #tpu.dot_dimension_numbers<[1], [0], [0], [1], [0, 0, 1, 1], [], []>} : vector<8x16xbf16>, vector<16x64xbf16>, vector<8x64xf32> -> vector<8x64xf32>
    %c0_8 = arith.constant 0 : index
    %c0_9 = arith.constant 0 : index
    %17 = vector.load %arg6[%c0_8, %c0_9] : memref<1x64xf32, #tpu.memory_space<vmem>>, vector<1x64xf32>
    %18 = vector.broadcast %17 : vector<1x64xf32> to vector<8x64xf32>
    %19 = arith.addf %16, %18 : vector<8x64xf32>
    %20 = arith.truncf %11 : vector<64x64xf32> to vector<64x64xbf16>
    %c0_10 = arith.constant 0 : index
    %c0_11 = arith.constant 0 : index
    %21 = vector.load %arg5[%c0_10, %c0_11] : memref<64x64xf32, #tpu.memory_space<vmem>>, vector<64x64xf32>
    %22 = arith.truncf %21 : vector<64x64xf32> to vector<64x64xbf16>
    %cst_12 = arith.constant dense<0.000000e+00> : vector<64x64xf32>
    %23 = tpu.matmul %20, %22, %cst_12 {dimension_numbers = #tpu.dot_dimension_numbers<[1], [0], [0], [1], [0, 0, 1, 1], [], []>} : vector<64x64xbf16>, vector<64x64xbf16>, vector<64x64xf32> -> vector<64x64xf32>
    %24 = vector.shape_cast %23 : vector<64x64xf32> to vector<8x8x64xf32>
    %25 = vector.shape_cast %19 : vector<8x64xf32> to vector<8x1x64xf32>
    %26 = vector.broadcast %25 : vector<8x1x64xf32> to vector<8x8x64xf32>
    %27 = arith.addf %24, %26 : vector<8x8x64xf32>
    %28 = math.tanh %27 : vector<8x8x64xf32>
    %29 = vector.shape_cast %28 : vector<8x8x64xf32> to vector<64x64xf32>
    %30 = arith.truncf %29 : vector<64x64xf32> to vector<64x64xbf16>
    %c0_13 = arith.constant 0 : index
    %c0_14 = arith.constant 0 : index
    %31 = vector.load %arg7[%c0_13, %c0_14] : memref<64x32xf32, #tpu.memory_space<vmem>>, vector<64x32xf32>
    %32 = arith.truncf %31 : vector<64x32xf32> to vector<64x32xbf16>
    %cst_15 = arith.constant dense<0.000000e+00> : vector<64x32xf32>
    %33 = tpu.matmul %30, %32, %cst_15 {dimension_numbers = #tpu.dot_dimension_numbers<[1], [0], [0], [1], [0, 0, 1, 1], [], []>} : vector<64x64xbf16>, vector<64x32xbf16>, vector<64x32xf32> -> vector<64x32xf32>
    %c0_16 = arith.constant 0 : index
    %c0_17 = arith.constant 0 : index
    %34 = vector.load %arg8[%c0_16, %c0_17] : memref<1x32xf32, #tpu.memory_space<vmem>>, vector<1x32xf32>
    %35 = vector.broadcast %34 : vector<1x32xf32> to vector<64x32xf32>
    %36 = arith.addf %33, %35 : vector<64x32xf32>
    %37 = math.tanh %36 : vector<64x32xf32>
    %38 = vector.shape_cast %37 : vector<64x32xf32> to vector<8x8x32xf32>
    %c0_18 = arith.constant 0 : index
    %c0_19 = arith.constant 0 : index
    %39 = vector.load %arg9[%c0_18, %c0_19] : memref<1x32xf32, #tpu.memory_space<vmem>>, vector<1x32xf32>
    %40 = vector.shape_cast %39 : vector<1x32xf32> to vector<1x1x32xf32>
    %41 = vector.broadcast %40 : vector<1x1x32xf32> to vector<8x8x32xf32>
    %42 = arith.mulf %38, %41 : vector<8x8x32xf32>
    %cst_20 = arith.constant dense<0.000000e+00> : vector<8x8xf32>
    %43 = vector.multi_reduction <add>, %42, %cst_20 [2] : vector<8x8x32xf32> to vector<8x8xf32>
    %44 = vector.shape_cast %43 : vector<8x8xf32> to vector<8x8x1xf32>
    %cst_21 = arith.constant dense<0xFF800000> : vector<8x1xf32>
    %45 = vector.multi_reduction <maximumf>, %44, %cst_21 [1] : vector<8x8x1xf32> to vector<8x1xf32>
    %46 = vector.shape_cast %45 : vector<8x1xf32> to vector<8x1x1xf32>
    %47 = vector.broadcast %46 : vector<8x1x1xf32> to vector<8x8x1xf32>
    %48 = arith.subf %44, %47 : vector<8x8x1xf32>
    %49 = math.exp %48 : vector<8x8x1xf32>
    %cst_22 = arith.constant dense<0.000000e+00> : vector<8x1xf32>
    %50 = vector.multi_reduction <add>, %49, %cst_22 [1] : vector<8x8x1xf32> to vector<8x1xf32>
    %51 = vector.shape_cast %50 : vector<8x1xf32> to vector<8x1x1xf32>
    %52 = tpu.reciprocal %51 {approx = true} : vector<8x1x1xf32> -> vector<8x1x1xf32>
    %53 = vector.broadcast %52 : vector<8x1x1xf32> to vector<8x8x1xf32>
    %54 = arith.mulf %49, %53 : vector<8x8x1xf32>
    %55 = vector.shape_cast %11 : vector<64x64xf32> to vector<8x8x64xf32>
    %56 = vector.broadcast %54 : vector<8x8x1xf32> to vector<8x8x64xf32>
    %57 = arith.mulf %56, %55 : vector<8x8x64xf32>
    %cst_23 = arith.constant dense<0.000000e+00> : vector<8x64xf32>
    %58 = vector.multi_reduction <add>, %57, %cst_23 [1] : vector<8x8x64xf32> to vector<8x64xf32>
    %c0_24 = arith.constant 0 : index
    %c0_25 = arith.constant 0 : index
    %59 = vector.load %arg10[%c0_24, %c0_25] : memref<8x64xf32, #tpu.memory_space<vmem>>, vector<8x64xf32>
    tpu.vector_store %arg10[%c0_24, %c0_25], %58 {strides = array<i32>} : memref<8x64xf32, #tpu.memory_space<vmem>>, vector<8x64xf32>,
    return
  }
  func.func @transform_0(%arg0: i32) -> (i32, i32) {
    %c0_i32 = arith.constant 0 : i32
    %c0_i32_0 = arith.constant 0 : i32
    return %arg0, %c0_i32 : i32, i32
  }
  func.func @transform_1(%arg0: i32) -> (i32, i32) {
    %c0_i32 = arith.constant 0 : i32
    %c0_i32_0 = arith.constant 0 : i32
    return %arg0, %c0_i32 : i32, i32
  }
  func.func @transform_2(%arg0: i32) -> (i32, i32) {
    %c0_i32 = arith.constant 0 : i32
    %c0_i32_0 = arith.constant 0 : i32
    %c0_i32_1 = arith.constant 0 : i32
    return %c0_i32, %c0_i32_0 : i32, i32
  }
  func.func @transform_3(%arg0: i32) -> (i32, i32) {
    %c0_i32 = arith.constant 0 : i32
    %c0_i32_0 = arith.constant 0 : i32
    %c0_i32_1 = arith.constant 0 : i32
    return %c0_i32, %c0_i32_0 : i32, i32
  }
  func.func @transform_4(%arg0: i32) -> (i32, i32) {
    %c0_i32 = arith.constant 0 : i32
    %c0_i32_0 = arith.constant 0 : i32
    %c0_i32_1 = arith.constant 0 : i32
    return %c0_i32, %c0_i32_0 : i32, i32
  }
  func.func @transform_5(%arg0: i32) -> (i32, i32) {
    %c0_i32 = arith.constant 0 : i32
    %c0_i32_0 = arith.constant 0 : i32
    %c0_i32_1 = arith.constant 0 : i32
    return %c0_i32, %c0_i32_0 : i32, i32
  }
  func.func @transform_6(%arg0: i32) -> (i32, i32) {
    %c0_i32 = arith.constant 0 : i32
    %c0_i32_0 = arith.constant 0 : i32
    %c0_i32_1 = arith.constant 0 : i32
    return %c0_i32, %c0_i32_0 : i32, i32
  }
  func.func @transform_7(%arg0: i32) -> (i32, i32) {
    %c0_i32 = arith.constant 0 : i32
    %c0_i32_0 = arith.constant 0 : i32
    %c0_i32_1 = arith.constant 0 : i32
    return %c0_i32, %c0_i32_0 : i32, i32
  }
  func.func @transform_8(%arg0: i32) -> (i32, i32) {
    %c0_i32 = arith.constant 0 : i32
    %c0_i32_0 = arith.constant 0 : i32
    %c0_i32_1 = arith.constant 0 : i32
    return %c0_i32, %c0_i32_0 : i32, i32
  }
  func.func @transform_9(%arg0: i32) -> (i32, i32) {
    %c0_i32 = arith.constant 0 : i32
    %c0_i32_0 = arith.constant 0 : i32
    return %arg0, %c0_i32 : i32, i32
  }
}

</mosaic_0001>

<llo_original>
// kernel: tpu_custom_call.1
$region0: #{tpu_custom_call.1}
  #allocation0 [shape = 'u32[]', space=smem, size = 0x4, offset = 0x4, fixed_abs, tag = 'smem constant byte address 0x4 - core index']
  #allocation1 [shape = 'u32[144,128]{1,0:T(1,128)}', space=vmem, size = 0x12000, scoped, tag = 'internal scratch']
  %s0 = inlined_call_operand.vmem [shape: f32[8,16], index: 0, kind: input, shape index: {}]
  %s1 = inlined_call_operand.vmem [shape: s32[8,8], index: 1, kind: input, shape index: {}]
  %s2 = inlined_call_operand.vmem [shape: f32[100,64], index: 2, kind: input, shape index: {}]
  %s3 = inlined_call_operand.vmem [shape: f32[16,64], index: 3, kind: input, shape index: {}]
  %s4 = inlined_call_operand.vmem [shape: f32[64,64], index: 4, kind: input, shape index: {}]
  %s5 = inlined_call_operand.vmem [shape: f32[1,64], index: 5, kind: input, shape index: {}]
  %s6 = inlined_call_operand.vmem [shape: f32[64,32], index: 6, kind: input, shape index: {}]
  %s7 = inlined_call_operand.vmem [shape: f32[1,32], index: 7, kind: input, shape index: {}]
  %s8 = inlined_call_operand.vmem [shape: f32[1,32], index: 8, kind: input, shape index: {}]
  %s9 = inlined_call_operand.hbm [shape: f32[8,64], index: 9, kind: output, shape index: {}]
  %s10 = sld [smem:[#allocation0]]
  $region46: #{tpu_custom_call.1} parent=0
    _
  %s12 = ssub.s32 1, %s10
  %s13 = scalar_select 0, %s12, %s10
  $region1: #{tpu_custom_call.1} parent=0
    #allocation2 [shape = 'u8[4096]{0}', space=vmem, size = 0x1000, scoped, tag = 'output window, operand 0, single buffered']
    #allocation3 [shape = 's32[1]{0}', space=sflag, size = 0x4, scoped, tag = 'scoped memory for tpu_custom_call.1']
    %14 = vsyncpa [#allocation3], 0
    // Predicated region
    $region2: #{tpu_custom_call.1} parent=1 // pred_check
      _
    $region3: #{tpu_custom_call.1} parent=1 // pred_check_branch
      %16 = sbr.rel (0) target = $region5
    $region4: #{tpu_custom_call.1} parent=1 // pred_region
      _
    $region5: #{tpu_custom_call.1} parent=1 // pred_fallthru
      _
    // Predicated region
    $region6: #{tpu_custom_call.1} parent=1 // pred_check
      _
    $region7: #{tpu_custom_call.1} parent=1 // pred_check_branch
      %18 = sbr.rel (0) target = $region9
    $region8: #{tpu_custom_call.1} parent=1 // pred_region
      _
    $region9: #{tpu_custom_call.1} parent=1 // pred_fallthru
      _
    // Predicated region
    $region10: #{tpu_custom_call.1} parent=1 // pred_check
      _
    $region11: #{tpu_custom_call.1} parent=1 // pred_check_branch
      %20 = sbr.rel (0) target = $region13
    $region12: #{tpu_custom_call.1} parent=1 // pred_region
      _
    $region13: #{tpu_custom_call.1} parent=1 // pred_fallthru
      _
    // Predicated region
    $region14: #{tpu_custom_call.1} parent=1 // pred_check
      _
    $region15: #{tpu_custom_call.1} parent=1 // pred_check_branch
      %22 = sbr.rel (0) target = $region17
    $region16: #{tpu_custom_call.1} parent=1 // pred_region
      _
    $region17: #{tpu_custom_call.1} parent=1 // pred_fallthru
      _
    // Predicated region
    $region18: #{tpu_custom_call.1} parent=1 // pred_check
      _
    $region19: #{tpu_custom_call.1} parent=1 // pred_check_branch
      %24 = sbr.rel (0) target = $region21
    $region20: #{tpu_custom_call.1} parent=1 // pred_region
      _
    $region21: #{tpu_custom_call.1} parent=1 // pred_fallthru
      _
    // Predicated region
    $region22: #{tpu_custom_call.1} parent=1 // pred_check
      _
    $region23: #{tpu_custom_call.1} parent=1 // pred_check_branch
      %26 = sbr.rel (0) target = $region25
    $region24: #{tpu_custom_call.1} parent=1 // pred_region
      _
    $region25: #{tpu_custom_call.1} parent=1 // pred_fallthru
      _
    // Predicated region
    $region26: #{tpu_custom_call.1} parent=1 // pred_check
      _
    $region27: #{tpu_custom_call.1} parent=1 // pred_check_branch
      %28 = sbr.rel (0) target = $region29
    $region28: #{tpu_custom_call.1} parent=1 // pred_region
      _
    $region29: #{tpu_custom_call.1} parent=1 // pred_fallthru
      _
    // Predicated region
    $region30: #{tpu_custom_call.1} parent=1 // pred_check
      _
    $region31: #{tpu_custom_call.1} parent=1 // pred_check_branch
      %30 = sbr.rel (0) target = $region33
    $region32: #{tpu_custom_call.1} parent=1 // pred_region
      _
    $region33: #{tpu_custom_call.1} parent=1 // pred_fallthru
      _
    // Predicated region
    $region34: #{tpu_custom_call.1} parent=1 // pred_check
      _
    $region35: #{tpu_custom_call.1} parent=1 // pred_check_branch
      %32 = sbr.rel (0) target = $region37
    $region36: #{tpu_custom_call.1} parent=1 // pred_region
      _
    $region37: #{tpu_custom_call.1} parent=1 // pred_fallthru
      _
    %v34 = vld [vmem:[%s1] sm:$0xff]
    %v35 = vlaneseq
    %v36 = vshrl.u32 %v35, 7
    %v37 = vsub.s32 0, %v36
    %v38 = vrot.slane %v34, %v37
    %40 = vbcast.lane.b32.xlu0 %v38, 256
    %v41 = vpop.permute.xlu0 %40
    %v42 = vlaneseq
    %v43 = vshrl.u32 %v42, 7
    %v44 = vsub.s32 1, %v43
    %v45 = vrot.slane %v34, %v44
    %47 = vbcast.lane.b32.xlu0 %v45, 256
    %v48 = vpop.permute.xlu0 %47
    %v49 = vlaneseq
    %v50 = vshrl.u32 %v49, 7
    %v51 = vsub.s32 2, %v50
    %v52 = vrot.slane %v34, %v51
    %54 = vbcast.lane.b32.xlu0 %v52, 256
    %v55 = vpop.permute.xlu0 %54
    %v56 = vlaneseq
    %v57 = vshrl.u32 %v56, 7
    %v58 = vsub.s32 3, %v57
    %v59 = vrot.slane %v34, %v58
    %61 = vbcast.lane.b32.xlu0 %v59, 256
    %v62 = vpop.permute.xlu0 %61
    %v63 = vlaneseq
    %v64 = vshrl.u32 %v63, 7
    %v65 = vsub.s32 4, %v64
    %v66 = vrot.slane %v34, %v65
    %68 = vbcast.lane.b32.xlu0 %v66, 256
    %v69 = vpop.permute.xlu0 %68
    %v70 = vlaneseq
    %v71 = vshrl.u32 %v70, 7
    %v72 = vsub.s32 5, %v71
    %v73 = vrot.slane %v34, %v72
    %75 = vbcast.lane.b32.xlu0 %v73, 256
    %v76 = vpop.permute.xlu0 %75
    %v77 = vlaneseq
    %v78 = vshrl.u32 %v77, 7
    %v79 = vsub.s32 6, %v78
    %v80 = vrot.slane %v34, %v79
    %82 = vbcast.lane.b32.xlu0 %v80, 256
    %v83 = vpop.permute.xlu0 %82
    %v84 = vlaneseq
    %v85 = vshrl.u32 %v84, 7
    %v86 = vsub.s32 7, %v85
    %v87 = vrot.slane %v34, %v86
    %89 = vbcast.lane.b32.xlu0 %v87, 256
    %v90 = vpop.permute.xlu0 %89
    %v91 = vlaneseq
    %v92 = vand.u32 %v91, 127
    %vm93 = vcmp.eq.s32.totalorder %v41, %v92
    %vm94 = vcmp.eq.s32.totalorder %v48, %v92
    %vm95 = vcmp.eq.s32.totalorder %v55, %v92
    %vm96 = vcmp.eq.s32.totalorder %v62, %v92
    %vm97 = vcmp.eq.s32.totalorder %v69, %v92
    %vm98 = vcmp.eq.s32.totalorder %v76, %v92
    %vm99 = vcmp.eq.s32.totalorder %v83, %v92
    %vm100 = vcmp.eq.s32.totalorder %v90, %v92
    %v101 = vsel %vm93, 1, 0
    %v102 = vsel %vm94, 1, 0
    %v103 = vsel %vm95, 1, 0
    %v104 = vsel %vm96, 1, 0
    %v105 = vsel %vm97, 1, 0
    %v106 = vsel %vm98, 1, 0
    %v107 = vsel %vm99, 1, 0
    %v108 = vsel %vm100, 1, 0
    %v109 = vcvt.s32.f32 %v101
    %v110 = vcvt.s32.f32 %v102
    %v111 = vcvt.s32.f32 %v103
    %v112 = vcvt.s32.f32 %v104
    %v113 = vcvt.s32.f32 %v105
    %v114 = vcvt.s32.f32 %v106
    %v115 = vcvt.s32.f32 %v107
    %v116 = vcvt.s32.f32 %v108
    %v117 = vpack.c.bf16 %v109, %v109
    %v118 = vpack.c.bf16 %v110, %v110
    %v119 = vpack.c.bf16 %v111, %v111
    %v120 = vpack.c.bf16 %v112, %v112
    %v121 = vpack.c.bf16 %v113, %v113
    %v122 = vpack.c.bf16 %v114, %v114
    %v123 = vpack.c.bf16 %v115, %v115
    %v124 = vpack.c.bf16 %v116, %v116
    %v125 = vld [vmem:[%s2] sm:$0xff]
    %v126 = vld [vmem:[%s2 + $0x8] sm:$0xff]
    %v127 = vld [vmem:[%s2 + $0x10] sm:$0xff]
    %v128 = vld [vmem:[%s2 + $0x18] sm:$0xff]
    %v129 = vld [vmem:[%s2 + $0x20] sm:$0xff]
    %v130 = vld [vmem:[%s2 + $0x28] sm:$0xff]
    %v131 = vld [vmem:[%s2 + $0x30] sm:$0xff]
    %v132 = vld [vmem:[%s2 + $0x38] sm:$0xff]
    %v133 = vld [vmem:[%s2 + $0x40] sm:$0xff]
    %v134 = vld [vmem:[%s2 + $0x48] sm:$0xff]
    %v135 = vld [vmem:[%s2 + $0x50] sm:$0xff]
    %v136 = vld [vmem:[%s2 + $0x58] sm:$0xff]
    %v137 = vld [vmem:[%s2 + $0x60] sm:$0xf]
    %v138 = vpack.c.bf16 %v126, %v125
    %v139 = vpack.c.bf16 %v128, %v127
    %v140 = vpack.c.bf16 %v130, %v129
    %v141 = vpack.c.bf16 %v132, %v131
    %v142 = vpack.c.bf16 %v134, %v133
    %v143 = vpack.c.bf16 %v136, %v135
    %v144 = vpack.c.bf16 %v137, %v137
    %v153 = vunpack.c.l.b16 %v117
    %v154 = vunpack.c.l.b16 %v118
    %v155 = vunpack.c.l.b16 %v119
    %v156 = vunpack.c.l.b16 %v120
    %v157 = vunpack.c.l.b16 %v121
    %v158 = vunpack.c.l.b16 %v122
    %v159 = vunpack.c.l.b16 %v123
    %v160 = vunpack.c.l.b16 %v124
    %v161 = vpack.c.b16 %v154, %v153
    %v162 = vpack.c.b16 %v156, %v155
    %v163 = vpack.c.b16 %v158, %v157
    %v164 = vpack.c.b16 %v160, %v159
    %vm165 = vcmask 818176
    %v167 = vsel %vm165, %v161, 0
    %v170 = vsel %vm165, %v162, 0
    %v173 = vsel %vm165, %v163, 0
    %v176 = vsel %vm165, %v164, 0
    %vm178 = vcmask 1041408
    %v180 = vsel %vm178, %v144, 0
    %182 = vmatprep.subr.bf16.mxu0 0
    %183 = vmatpush1.bf16.msra.mxu0 %v138
    %184 = vmatprep.subr.bf16.mxu0 0
    %185 = vmatpush1.bf16.msra.mxu0 %v139
    %186 = vmatprep.subr.bf16.mxu0 0
    %187 = vmatpush1.bf16.msra.mxu0 %v140
    %188 = vmatprep.subr.bf16.mxu0 0
    %189 = vmatpush1.bf16.msra.mxu0 %v141
    %190 = vmatprep.subr.bf16.mxu0 0
    %191 = vmatpush1.bf16.msra.mxu0 %v142
    %192 = vmatprep.subr.bf16.mxu0 0
    %193 = vmatpush1.bf16.msra.mxu0 %v143
    %194 = vmatprep.subr.bf16.mxu0 0
    %195 = vmatpush1.bf16.msra.mxu0 %v180
    %196 = vmatprep.subr.bf16.mxu0 0
    %197 = vmatpush1.bf16.msra.mxu0 0
    %198 = vmatprep.subr.bf16.mxu0 0
    %199 = vmatpush1.bf16.msra.mxu0 0
    %200 = vmatprep.subr.bf16.mxu0 0
    %201 = vmatpush1.bf16.msra.mxu0 0
    %202 = vmatprep.subr.bf16.mxu0 0
    %203 = vmatpush1.bf16.msra.mxu0 0
    %204 = vmatprep.subr.bf16.mxu0 0
    %205 = vmatpush1.bf16.msra.mxu0 0
    %206 = vmatprep.subr.bf16.mxu0 0
    %207 = vmatpush1.bf16.msra.mxu0 0
    %208 = vmatprep.subr.bf16.mxu0 0
    %209 = vmatpush1.bf16.msra.mxu0 0
    %210 = vmatprep.subr.bf16.mxu0 0
    %211 = vmatpush1.bf16.msra.mxu0 0
    %212 = vmatprep.subr.bf16.mxu0 0
    %213 = vmatpush1.bf16.msra.mxu0 0
    %214 = vmatprep.mubr.bf16.mxu0 0
    %215 = vmatmul.mubr.bf16.gmra.mrb[0].mxu0 %v167
    %v216 = vpop.f32.mrb[0].mxu0
    %v217 = vadd.f32 0.0, %v216
    %v218 = vpop.f32.mrb[0].mxu0
    %v219 = vpop.f32.mrb[0].mxu0
    %v220 = vadd.f32 0.0, %v219
    %v221 = vpop.f32.mrb[0].mxu0
    %222 = vmatprep.mubr.bf16.mxu0 0
    %223 = vmatmul.mubr.bf16.gmra.mrb[0].mxu0 %v170
    %v224 = vpop.f32.mrb[0].mxu0
    %v225 = vadd.f32 0.0, %v224
    %v226 = vpop.f32.mrb[0].mxu0
    %v227 = vpop.f32.mrb[0].mxu0
    %v228 = vadd.f32 0.0, %v227
    %v229 = vpop.f32.mrb[0].mxu0
    %230 = vmatprep.mubr.bf16.mxu0 0
    %231 = vmatmul.mubr.bf16.gmra.mrb[0].mxu0 %v173
    %v232 = vpop.f32.mrb[0].mxu0
    %v233 = vadd.f32 0.0, %v232
    %v234 = vpop.f32.mrb[0].mxu0
    %v235 = vpop.f32.mrb[0].mxu0
    %v236 = vadd.f32 0.0, %v235
    %v237 = vpop.f32.mrb[0].mxu0
    %238 = vmatprep.mubr.bf16.mxu0 0
    %239 = vmatmul.mubr.bf16.gmra.mrb[0].mxu0 %v176
    %v240 = vpop.f32.mrb[0].mxu0
    %v241 = vadd.f32 0.0, %v240
    %v242 = vpop.f32.mrb[0].mxu0
    %v243 = vpop.f32.mrb[0].mxu0
    %v244 = vadd.f32 0.0, %v243
    %v245 = vpop.f32.mrb[0].mxu0
    %246 = vdwg.mxu0
    %v247 = vld [vmem:[%s0] sm:$0xff]
    %v248 = vpack.c.bf16 %v247, %v247
    %v249 = vld [vmem:[%s3] sm:$0xff]
    %v250 = vld [vmem:[%s3 + $0x8] sm:$0xff]
    %v251 = vpack.c.bf16 %v250, %v249
    %v252 = vld [vmem:[%s5] sm:$0x1]
    %v254 = vlaneseq
    %v255 = vshrl.u32 %v254, 7
    %v256 = vsub.s32 0, %v255
    %v257 = vrot.slane %v252, %v256
    %vm259 = vcmask 130048
    %v261 = vsel %vm259, %v248, 0
    %263 = vmatprep.subr.bf16.mxu0 0
    %264 = vmatpush1.bf16.msra.mxu0 %v251
    %265 = vmatprep.subr.bf16.mxu0 0
    %266 = vmatpush1.bf16.msra.mxu0 0
    %267 = vmatprep.subr.bf16.mxu0 0
    %268 = vmatpush1.bf16.msra.mxu0 0
    %269 = vmatprep.subr.bf16.mxu0 0
    %270 = vmatpush1.bf16.msra.mxu0 0
    %271 = vmatprep.subr.bf16.mxu0 0
    %272 = vmatpush1.bf16.msra.mxu0 0
    %273 = vmatprep.subr.bf16.mxu0 0
    %274 = vmatpush1.bf16.msra.mxu0 0
    %275 = vmatprep.subr.bf16.mxu0 0
    %276 = vmatpush1.bf16.msra.mxu0 0
    %277 = vmatprep.subr.bf16.mxu0 0
    %278 = vmatpush1.bf16.msra.mxu0 0
    %279 = vmatprep.subr.bf16.mxu0 0
    %280 = vmatpush1.bf16.msra.mxu0 0
    %281 = vmatprep.subr.bf16.mxu0 0
    %282 = vmatpush1.bf16.msra.mxu0 0
    %283 = vmatprep.subr.bf16.mxu0 0
    %284 = vmatpush1.bf16.msra.mxu0 0
    %285 = vmatprep.subr.bf16.mxu0 0
    %286 = vmatpush1.bf16.msra.mxu0 0
    %287 = vmatprep.subr.bf16.mxu0 0
    %288 = vmatpush1.bf16.msra.mxu0 0
    %289 = vmatprep.subr.bf16.mxu0 0
    %290 = vmatpush1.bf16.msra.mxu0 0
    %291 = vmatprep.subr.bf16.mxu0 0
    %292 = vmatpush1.bf16.msra.mxu0 0
    %293 = vmatprep.subr.bf16.mxu0 0
    %294 = vmatpush1.bf16.msra.mxu0 0
    %295 = vmatprep.mubr.bf16.mxu0 0
    %296 = vmatmul.mubr.bf16.gmra.mrb[0].mxu0 %v261
    %v297 = vpop.f32.mrb[0].mxu0
    %v298 = vadd.f32 %v257, %v297
    %v299 = vpop.f32.mrb[0].mxu0
    %v300 = vpop.f32.mrb[0].mxu0
    %v301 = vpop.f32.mrb[0].mxu0
    %302 = vdwg.mxu0
    %v303 = vpack.c.bf16 %v220, %v217
    %v304 = vpack.c.bf16 %v228, %v225
    %v305 = vpack.c.bf16 %v236, %v233
    %v306 = vpack.c.bf16 %v244, %v241
    %v307 = vld [vmem:[%s4] sm:$0xff]
    %v308 = vld [vmem:[%s4 + $0x8] sm:$0xff]
    %v309 = vld [vmem:[%s4 + $0x10] sm:$0xff]
    %v310 = vld [vmem:[%s4 + $0x18] sm:$0xff]
    %v311 = vld [vmem:[%s4 + $0x20] sm:$0xff]
    %v312 = vld [vmem:[%s4 + $0x28] sm:$0xff]
    %v313 = vld [vmem:[%s4 + $0x30] sm:$0xff]
    %v314 = vld [vmem:[%s4 + $0x38] sm:$0xff]
    %v315 = vpack.c.bf16 %v308, %v307
    %v316 = vpack.c.bf16 %v310, %v309
    %v317 = vpack.c.bf16 %v312, %v311
    %v318 = vpack.c.bf16 %v314, %v313
    %vm319 = vcmask 523264
    %v321 = vsel %vm319, %v303, 0
    %v324 = vsel %vm319, %v304, 0
    %v327 = vsel %vm319, %v305, 0
    %v330 = vsel %vm319, %v306, 0
    %332 = vmatprep.subr.bf16.mxu0 0
    %333 = vmatpush1.bf16.msra.mxu0 %v315
    %334 = vmatprep.subr.bf16.mxu0 0
    %335 = vmatpush1.bf16.msra.mxu0 %v316
    %336 = vmatprep.subr.bf16.mxu0 0
    %337 = vmatpush1.bf16.msra.mxu0 %v317
    %338 = vmatprep.subr.bf16.mxu0 0
    %339 = vmatpush1.bf16.msra.mxu0 %v318
    %340 = vmatprep.subr.bf16.mxu0 0
    %341 = vmatpush1.bf16.msra.mxu0 0
    %342 = vmatprep.subr.bf16.mxu0 0
    %343 = vmatpush1.bf16.msra.mxu0 0
    %344 = vmatprep.subr.bf16.mxu0 0
    %345 = vmatpush1.bf16.msra.mxu0 0
    %346 = vmatprep.subr.bf16.mxu0 0
    %347 = vmatpush1.bf16.msra.mxu0 0
    %348 = vmatprep.subr.bf16.mxu0 0
    %349 = vmatpush1.bf16.msra.mxu0 0
    %350 = vmatprep.subr.bf16.mxu0 0
    %351 = vmatpush1.bf16.msra.mxu0 0
    %352 = vmatprep.subr.bf16.mxu0 0
    %353 = vmatpush1.bf16.msra.mxu0 0
    %354 = vmatprep.subr.bf16.mxu0 0
    %355 = vmatpush1.bf16.msra.mxu0 0
    %356 = vmatprep.subr.bf16.mxu0 0
    %357 = vmatpush1.bf16.msra.mxu0 0
    %358 = vmatprep.subr.bf16.mxu0 0
    %359 = vmatpush1.bf16.msra.mxu0 0
    %360 = vmatprep.subr.bf16.mxu0 0
    %361 = vmatpush1.bf16.msra.mxu0 0
    %362 = vmatprep.subr.bf16.mxu0 0
    %363 = vmatpush1.bf16.msra.mxu0 0
    %364 = vmatprep.mubr.bf16.mxu0 0
    %365 = vmatmul.mubr.bf16.gmra.mrb[0].mxu0 %v321
    %v366 = vpop.f32.mrb[0].mxu0
    %v367 = vadd.f32 0.0, %v366
    %v368 = vpop.f32.mrb[0].mxu0
    %v369 = vpop.f32.mrb[0].mxu0
    %v370 = vadd.f32 0.0, %v369
    %v371 = vpop.f32.mrb[0].mxu0
    %372 = vmatprep.mubr.bf16.mxu0 0
    %373 = vmatmul.mubr.bf16.gmra.mrb[0].mxu0 %v324
    %v374 = vpop.f32.mrb[0].mxu0
    %v375 = vadd.f32 0.0, %v374
    %v376 = vpop.f32.mrb[0].mxu0
    %v377 = vpop.f32.mrb[0].mxu0
    %v378 = vadd.f32 0.0, %v377
    %v379 = vpop.f32.mrb[0].mxu0
    %380 = vmatprep.mubr.bf16.mxu0 0
    %381 = vmatmul.mubr.bf16.gmra.mrb[0].mxu0 %v327
    %v382 = vpop.f32.mrb[0].mxu0
    %v383 = vadd.f32 0.0, %v382
    %v384 = vpop.f32.mrb[0].mxu0
    %v385 = vpop.f32.mrb[0].mxu0
    %v386 = vadd.f32 0.0, %v385
    %v387 = vpop.f32.mrb[0].mxu0
    %388 = vmatprep.mubr.bf16.mxu0 0
    %389 = vmatmul.mubr.bf16.gmra.mrb[0].mxu0 %v330
    %v390 = vpop.f32.mrb[0].mxu0
    %v391 = vadd.f32 0.0, %v390
    %v392 = vpop.f32.mrb[0].mxu0
    %v393 = vpop.f32.mrb[0].mxu0
    %v394 = vadd.f32 0.0, %v393
    %v395 = vpop.f32.mrb[0].mxu0
    %396 = vdwg.mxu0
    %v398 = vcombine.high %v298, %v298
    %v400 = vunpack.c.l.s4 1966171168
    %v401 = vunpack.c.0.s8 %v400
    %v402 = vlaneseq
    %v403 = vshrl.u32 %v402, 7
    %v404 = vsub.s32 %v401, %v403
    %v405 = vrot.slane %v298, %v404
    %v407 = vunpack.c.l.s4 1966171168
    %v408 = vunpack.c.0.s8 %v407
    %v409 = vlaneseq
    %v410 = vshrl.u32 %v409, 7
    %v411 = vsub.s32 %v408, %v410
    %v412 = vrot.slane %v398, %v411
    %v413 = vcombine.high %v405, %v405
    %v414 = vcombine.high %v412, %v412
    %v416 = vunpack.c.l.s4 1966171168
    %v417 = vunpack.c.0.s8 %v416
    %v418 = vlaneseq
    %v419 = vshrl.u32 %v418, 7
    %v420 = vsub.s32 %v417, %v419
    %v421 = vrot.slane %v405, %v420
    %v423 = vunpack.c.l.s4 1966171168
    %v424 = vunpack.c.0.s8 %v423
    %v425 = vlaneseq
    %v426 = vshrl.u32 %v425, 7
    %v427 = vsub.s32 %v424, %v426
    %v428 = vrot.slane %v412, %v427
    %v430 = vunpack.c.l.s4 1966171168
    %v431 = vunpack.c.0.s8 %v430
    %v432 = vlaneseq
    %v433 = vshrl.u32 %v432, 7
    %v434 = vsub.s32 %v431, %v433
    %v435 = vrot.slane %v413, %v434
    %v437 = vunpack.c.l.s4 1966171168
    %v438 = vunpack.c.0.s8 %v437
    %v439 = vlaneseq
    %v440 = vshrl.u32 %v439, 7
    %v441 = vsub.s32 %v438, %v440
    %v442 = vrot.slane %v414, %v441
    %v443 = vcombine.high %v421, %v421
    %v444 = vcombine.high %v428, %v428
    %v445 = vcombine.high %v435, %v435
    %v446 = vcombine.high %v442, %v442
    %v447 = vlaneseq
    %v448 = vshrl.u32 %v447, 7
    %v449 = vsub.s32 0, %v448
    %v450 = vrot.slane %v421, %v449
    %v451 = vlaneseq
    %v452 = vshrl.u32 %v451, 7
    %v453 = vsub.s32 0, %v452
    %v454 = vrot.slane %v435, %v453
    %v455 = vlaneseq
    %v456 = vshrl.u32 %v455, 7
    %v457 = vsub.s32 0, %v456
    %v458 = vrot.slane %v443, %v457
    %v459 = vlaneseq
    %v460 = vshrl.u32 %v459, 7
    %v461 = vsub.s32 0, %v460
    %v462 = vrot.slane %v445, %v461
    %v463 = vlaneseq
    %v464 = vshrl.u32 %v463, 7
    %v465 = vsub.s32 0, %v464
    %v466 = vrot.slane %v428, %v465
    %v467 = vlaneseq
    %v468 = vshrl.u32 %v467, 7
    %v469 = vsub.s32 0, %v468
    %v470 = vrot.slane %v442, %v469
    %v471 = vlaneseq
    %v472 = vshrl.u32 %v471, 7
    %v473 = vsub.s32 0, %v472
    %v474 = vrot.slane %v444, %v473
    %v475 = vlaneseq
    %v476 = vshrl.u32 %v475, 7
    %v477 = vsub.s32 0, %v476
    %v478 = vrot.slane %v446, %v477
    %v487 = vadd.f32 %v367, %v450
    %v488 = vadd.f32 %v370, %v454
    %v489 = vadd.f32 %v375, %v458
    %v490 = vadd.f32 %v378, %v462
    %v491 = vadd.f32 %v383, %v466
    %v492 = vadd.f32 %v386, %v470
    %v493 = vadd.f32 %v391, %v474
    %v494 = vadd.f32 %v394, %v478
    %v495 = vtanh.pop %v487
    %v496 = vtanh.pop %v488
    %v497 = vtanh.pop %v489
    %v498 = vtanh.pop %v490
    %v499 = vtanh.pop %v491
    %v500 = vtanh.pop %v492
    %v501 = vtanh.pop %v493
    %v502 = vtanh.pop %v494
    %v503 = vpack.c.bf16 %v496, %v495
    %v504 = vpack.c.bf16 %v498, %v497
    %v505 = vpack.c.bf16 %v500, %v499
    %v506 = vpack.c.bf16 %v502, %v501
    %v507 = vld [vmem:[%s6] sm:$0xff]
    %v508 = vld [vmem:[%s6 + $0x8] sm:$0xff]
    %v509 = vld [vmem:[%s6 + $0x10] sm:$0xff]
    %v510 = vld [vmem:[%s6 + $0x18] sm:$0xff]
    %v511 = vld [vmem:[%s6 + $0x20] sm:$0xff]
    %v512 = vld [vmem:[%s6 + $0x28] sm:$0xff]
    %v513 = vld [vmem:[%s6 + $0x30] sm:$0xff]
    %v514 = vld [vmem:[%s6 + $0x38] sm:$0xff]
    %v515 = vpack.c.bf16 %v508, %v507
    %v516 = vpack.c.bf16 %v510, %v509
    %v517 = vpack.c.bf16 %v512, %v511
    %v518 = vpack.c.bf16 %v514, %v513
    %v519 = vld [vmem:[%s7] sm:$0x1]
    %v521 = vlaneseq
    %v522 = vshrl.u32 %v521, 7
    %v523 = vsub.s32 0, %v522
    %v524 = vrot.slane %v519, %v523
    %v527 = vsel %vm319, %v503, 0
    %v530 = vsel %vm319, %v504, 0
    %v533 = vsel %vm319, %v505, 0
    %v536 = vsel %vm319, %v506, 0
    %538 = vmatprep.subr.bf16.mxu0 0
    %539 = vmatpush1.bf16.msra.mxu0 %v515
    %540 = vmatprep.subr.bf16.mxu0 0
    %541 = vmatpush1.bf16.msra.mxu0 %v516
    %542 = vmatprep.subr.bf16.mxu0 0
    %543 = vmatpush1.bf16.msra.mxu0 %v517
    %544 = vmatprep.subr.bf16.mxu0 0
    %545 = vmatpush1.bf16.msra.mxu0 %v518
    %546 = vmatprep.subr.bf16.mxu0 0
    %547 = vmatpush1.bf16.msra.mxu0 0
    %548 = vmatprep.subr.bf16.mxu0 0
    %549 = vmatpush1.bf16.msra.mxu0 0
    %550 = vmatprep.subr.bf16.mxu0 0
    %551 = vmatpush1.bf16.msra.mxu0 0
    %552 = vmatprep.subr.bf16.mxu0 0
    %553 = vmatpush1.bf16.msra.mxu0 0
    %554 = vmatprep.subr.bf16.mxu0 0
    %555 = vmatpush1.bf16.msra.mxu0 0
    %556 = vmatprep.subr.bf16.mxu0 0
    %557 = vmatpush1.bf16.msra.mxu0 0
    %558 = vmatprep.subr.bf16.mxu0 0
    %559 = vmatpush1.bf16.msra.mxu0 0
    %560 = vmatprep.subr.bf16.mxu0 0
    %561 = vmatpush1.bf16.msra.mxu0 0
    %562 = vmatprep.subr.bf16.mxu0 0
    %563 = vmatpush1.bf16.msra.mxu0 0
    %564 = vmatprep.subr.bf16.mxu0 0
    %565 = vmatpush1.bf16.msra.mxu0 0
    %566 = vmatprep.subr.bf16.mxu0 0
    %567 = vmatpush1.bf16.msra.mxu0 0
    %568 = vmatprep.subr.bf16.mxu0 0
    %569 = vmatpush1.bf16.msra.mxu0 0
    %570 = vmatprep.mubr.bf16.mxu0 0
    %571 = vmatmul.mubr.bf16.gmra.mrb[0].mxu0 %v527
    %v572 = vpop.f32.mrb[0].mxu0
    %v573 = vadd.f32 %v524, %v572
    %v574 = vpop.f32.mrb[0].mxu0
    %v575 = vpop.f32.mrb[0].mxu0
    %v576 = vadd.f32 %v524, %v575
    %v577 = vpop.f32.mrb[0].mxu0
    %578 = vmatprep.mubr.bf16.mxu0 0
    %579 = vmatmul.mubr.bf16.gmra.mrb[0].mxu0 %v530
    %v580 = vpop.f32.mrb[0].mxu0
    %v581 = vadd.f32 %v524, %v580
    %v582 = vpop.f32.mrb[0].mxu0
    %v583 = vpop.f32.mrb[0].mxu0
    %v584 = vadd.f32 %v524, %v583
    %v585 = vpop.f32.mrb[0].mxu0
    %586 = vmatprep.mubr.bf16.mxu0 0
    %587 = vmatmul.mubr.bf16.gmra.mrb[0].mxu0 %v533
    %v588 = vpop.f32.mrb[0].mxu0
    %v589 = vadd.f32 %v524, %v588
    %v590 = vpop.f32.mrb[0].mxu0
    %v591 = vpop.f32.mrb[0].mxu0
    %v592 = vadd.f32 %v524, %v591
    %v593 = vpop.f32.mrb[0].mxu0
    %594 = vmatprep.mubr.bf16.mxu0 0
    %595 = vmatmul.mubr.bf16.gmra.mrb[0].mxu0 %v536
    %v596 = vpop.f32.mrb[0].mxu0
    %v597 = vadd.f32 %v524, %v596
    %v598 = vpop.f32.mrb[0].mxu0
    %v599 = vpop.f32.mrb[0].mxu0
    %v600 = vadd.f32 %v524, %v599
    %v601 = vpop.f32.mrb[0].mxu0
    %602 = vdwg.mxu0
    %v603 = vtanh.pop %v573
    %v604 = vtanh.pop %v576
    %v605 = vtanh.pop %v581
    %v606 = vtanh.pop %v584
    %v607 = vtanh.pop %v589
    %v608 = vtanh.pop %v592
    %v609 = vtanh.pop %v597
    %v610 = vtanh.pop %v600
    %v611 = vld [vmem:[%s8] sm:$0x1]
    %v613 = vlaneseq
    %v614 = vshrl.u32 %v613, 7
    %v615 = vsub.s32 0, %v614
    %v616 = vrot.slane %v611, %v615
    %v618 = vmul.f32 %v603, %v616
    %v619 = vmul.f32 %v604, %v616
    %v620 = vmul.f32 %v605, %v616
    %v621 = vmul.f32 %v606, %v616
    %v622 = vmul.f32 %v607, %v616
    %v623 = vmul.f32 %v608, %v616
    %v624 = vmul.f32 %v609, %v616
    %v625 = vmul.f32 %v610, %v616
    %vm626 = vcmask 261120
    %v627 = vsel %vm626, %v618, 0.0
    %628 = vadd.xlane.f32.xlu0 %v627
    %v629 = vpop.xlane.xlu0 %628
    %v630 = vsel %vm626, %v619, 0.0
    %631 = vadd.xlane.f32.xlu0 %v630
    %v632 = vpop.xlane.xlu0 %631
    %v633 = vsel %vm626, %v620, 0.0
    %634 = vadd.xlane.f32.xlu0 %v633
    %v635 = vpop.xlane.xlu0 %634
    %v636 = vsel %vm626, %v621, 0.0
    %637 = vadd.xlane.f32.xlu0 %v636
    %v638 = vpop.xlane.xlu0 %637
    %v639 = vsel %vm626, %v622, 0.0
    %640 = vadd.xlane.f32.xlu0 %v639
    %v641 = vpop.xlane.xlu0 %640
    %v642 = vsel %vm626, %v623, 0.0
    %643 = vadd.xlane.f32.xlu0 %v642
    %v644 = vpop.xlane.xlu0 %643
    %v645 = vsel %vm626, %v624, 0.0
    %646 = vadd.xlane.f32.xlu0 %v645
    %v647 = vpop.xlane.xlu0 %646
    %v648 = vsel %vm626, %v625, 0.0
    %649 = vadd.xlane.f32.xlu0 %v648
    %v650 = vpop.xlane.xlu0 %649
    %v651 = vrot.slane %v629, 4
    %v652 = vmax.f32 %v629, %v651
    %v653 = vrot.slane %v652, 2
    %v654 = vmax.f32 %v652, %v653
    %v655 = vrot.slane %v654, 1
    %v656 = vmax.f32 %v654, %v655
    %v657 = vrot.slane %v632, 4
    %v658 = vmax.f32 %v632, %v657
    %v659 = vrot.slane %v658, 2
    %v660 = vmax.f32 %v658, %v659
    %v661 = vrot.slane %v660, 1
    %v662 = vmax.f32 %v660, %v661
    %v663 = vrot.slane %v635, 4
    %v664 = vmax.f32 %v635, %v663
    %v665 = vrot.slane %v664, 2
    %v666 = vmax.f32 %v664, %v665
    %v667 = vrot.slane %v666, 1
    %v668 = vmax.f32 %v666, %v667
    %v669 = vrot.slane %v638, 4
    %v670 = vmax.f32 %v638, %v669
    %v671 = vrot.slane %v670, 2
    %v672 = vmax.f32 %v670, %v671
    %v673 = vrot.slane %v672, 1
    %v674 = vmax.f32 %v672, %v673
    %v675 = vrot.slane %v641, 4
    %v676 = vmax.f32 %v641, %v675
    %v677 = vrot.slane %v676, 2
    %v678 = vmax.f32 %v676, %v677
    %v679 = vrot.slane %v678, 1
    %v680 = vmax.f32 %v678, %v679
    %v681 = vrot.slane %v644, 4
    %v682 = vmax.f32 %v644, %v681
    %v683 = vrot.slane %v682, 2
    %v684 = vmax.f32 %v682, %v683
    %v685 = vrot.slane %v684, 1
    %v686 = vmax.f32 %v684, %v685
    %v687 = vrot.slane %v647, 4
    %v688 = vmax.f32 %v647, %v687
    %v689 = vrot.slane %v688, 2
    %v690 = vmax.f32 %v688, %v689
    %v691 = vrot.slane %v690, 1
    %v692 = vmax.f32 %v690, %v691
    %v693 = vrot.slane %v650, 4
    %v694 = vmax.f32 %v650, %v693
    %v695 = vrot.slane %v694, 2
    %v696 = vmax.f32 %v694, %v695
    %v697 = vrot.slane %v696, 1
    %v698 = vmax.f32 %v696, %v697
    %v699 = vsub.f32 %v629, %v656
    %v700 = vsub.f32 %v632, %v662
    %v701 = vsub.f32 %v635, %v668
    %v702 = vsub.f32 %v638, %v674
    %v703 = vsub.f32 %v641, %v680
    %v704 = vsub.f32 %v644, %v686
    %v705 = vsub.f32 %v647, %v692
    %v706 = vsub.f32 %v650, %v698
    %v707 = vmul.f32 %v699, 1.442695
    %v708 = vpow.pop %v707
    %v709 = vmul.f32 %v700, 1.442695
    %v710 = vpow.pop %v709
    %v711 = vmul.f32 %v701, 1.442695
    %v712 = vpow.pop %v711
    %v713 = vmul.f32 %v702, 1.442695
    %v714 = vpow.pop %v713
    %v715 = vmul.f32 %v703, 1.442695
    %v716 = vpow.pop %v715
    %v717 = vmul.f32 %v704, 1.442695
    %v718 = vpow.pop %v717
    %v719 = vmul.f32 %v705, 1.442695
    %v720 = vpow.pop %v719
    %v721 = vmul.f32 %v706, 1.442695
    %v722 = vpow.pop %v721
    %v723 = vrot.slane %v708, 4
    %v724 = vadd.f32 %v708, %v723
    %v725 = vrot.slane %v724, 2
    %v726 = vadd.f32 %v724, %v725
    %v727 = vrot.slane %v726, 1
    %v728 = vadd.f32 %v726, %v727
    %v729 = vrot.slane %v710, 4
    %v730 = vadd.f32 %v710, %v729
    %v731 = vrot.slane %v730, 2
    %v732 = vadd.f32 %v730, %v731
    %v733 = vrot.slane %v732, 1
    %v734 = vadd.f32 %v732, %v733
    %v735 = vrot.slane %v712, 4
    %v736 = vadd.f32 %v712, %v735
    %v737 = vrot.slane %v736, 2
    %v738 = vadd.f32 %v736, %v737
    %v739 = vrot.slane %v738, 1
    %v740 = vadd.f32 %v738, %v739
    %v741 = vrot.slane %v714, 4
    %v742 = vadd.f32 %v714, %v741
    %v743 = vrot.slane %v742, 2
    %v744 = vadd.f32 %v742, %v743
    %v745 = vrot.slane %v744, 1
    %v746 = vadd.f32 %v744, %v745
    %v747 = vrot.slane %v716, 4
    %v748 = vadd.f32 %v716, %v747
    %v749 = vrot.slane %v748, 2
    %v750 = vadd.f32 %v748, %v749
    %v751 = vrot.slane %v750, 1
    %v752 = vadd.f32 %v750, %v751
    %v753 = vrot.slane %v718, 4
    %v754 = vadd.f32 %v718, %v753
    %v755 = vrot.slane %v754, 2
    %v756 = vadd.f32 %v754, %v755
    %v757 = vrot.slane %v756, 1
    %v758 = vadd.f32 %v756, %v757
    %v759 = vrot.slane %v720, 4
    %v760 = vadd.f32 %v720, %v759
    %v761 = vrot.slane %v760, 2
    %v762 = vadd.f32 %v760, %v761
    %v763 = vrot.slane %v762, 1
    %v764 = vadd.f32 %v762, %v763
    %v765 = vrot.slane %v722, 4
    %v766 = vadd.f32 %v722, %v765
    %v767 = vrot.slane %v766, 2
    %v768 = vadd.f32 %v766, %v767
    %v769 = vrot.slane %v768, 1
    %v770 = vadd.f32 %v768, %v769
    %v771 = vrcp.pop %v728
    %v772 = vrcp.pop %v734
    %v773 = vrcp.pop %v740
    %v774 = vrcp.pop %v746
    %v775 = vrcp.pop %v752
    %v776 = vrcp.pop %v758
    %v777 = vrcp.pop %v764
    %v778 = vrcp.pop %v770
    %v779 = vmul.f32 %v708, %v771
    %v780 = vmul.f32 %v710, %v772
    %v781 = vmul.f32 %v712, %v773
    %v782 = vmul.f32 %v714, %v774
    %v783 = vmul.f32 %v716, %v775
    %v784 = vmul.f32 %v718, %v776
    %v785 = vmul.f32 %v720, %v777
    %v786 = vmul.f32 %v722, %v778
    %v787 = vmul.f32 %v779, %v217
    %v788 = vmul.f32 %v780, %v220
    %v789 = vmul.f32 %v781, %v225
    %v790 = vmul.f32 %v782, %v228
    %v791 = vmul.f32 %v783, %v233
    %v792 = vmul.f32 %v784, %v236
    %v793 = vmul.f32 %v785, %v241
    %v794 = vmul.f32 %v786, %v244
    %v795 = vsel %vm319, %v787, 0.0
    %v796 = vrot.slane %v795, 4
    %v797 = vadd.f32 %v795, %v796
    %v798 = vrot.slane %v797, 2
    %v799 = vadd.f32 %v797, %v798
    %v800 = vrot.slane %v799, 1
    %v801 = vadd.f32 %v799, %v800
    %v802 = vsel %vm319, %v788, 0.0
    %v803 = vrot.slane %v802, 4
    %v804 = vadd.f32 %v802, %v803
    %v805 = vrot.slane %v804, 2
    %v806 = vadd.f32 %v804, %v805
    %v807 = vrot.slane %v806, 1
    %v808 = vadd.f32 %v806, %v807
    %v809 = vsel %vm319, %v789, 0.0
    %v810 = vrot.slane %v809, 4
    %v811 = vadd.f32 %v809, %v810
    %v812 = vrot.slane %v811, 2
    %v813 = vadd.f32 %v811, %v812
    %v814 = vrot.slane %v813, 1
    %v815 = vadd.f32 %v813, %v814
    %v816 = vsel %vm319, %v790, 0.0
    %v817 = vrot.slane %v816, 4
    %v818 = vadd.f32 %v816, %v817
    %v819 = vrot.slane %v818, 2
    %v820 = vadd.f32 %v818, %v819
    %v821 = vrot.slane %v820, 1
    %v822 = vadd.f32 %v820, %v821
    %v823 = vsel %vm319, %v791, 0.0
    %v824 = vrot.slane %v823, 4
    %v825 = vadd.f32 %v823, %v824
    %v826 = vrot.slane %v825, 2
    %v827 = vadd.f32 %v825, %v826
    %v828 = vrot.slane %v827, 1
    %v829 = vadd.f32 %v827, %v828
    %v830 = vsel %vm319, %v792, 0.0
    %v831 = vrot.slane %v830, 4
    %v832 = vadd.f32 %v830, %v831
    %v833 = vrot.slane %v832, 2
    %v834 = vadd.f32 %v832, %v833
    %v835 = vrot.slane %v834, 1
    %v836 = vadd.f32 %v834, %v835
    %v837 = vsel %vm319, %v793, 0.0
    %v838 = vrot.slane %v837, 4
    %v839 = vadd.f32 %v837, %v838
    %v840 = vrot.slane %v839, 2
    %v841 = vadd.f32 %v839, %v840
    %v842 = vrot.slane %v841, 1
    %v843 = vadd.f32 %v841, %v842
    %v844 = vsel %vm319, %v794, 0.0
    %v845 = vrot.slane %v844, 4
    %v846 = vadd.f32 %v844, %v845
    %v847 = vrot.slane %v846, 2
    %v848 = vadd.f32 %v846, %v847
    %v849 = vrot.slane %v848, 1
    %v850 = vadd.f32 %v848, %v849
    %vm859 = vcmask 1041409
    %v860 = vsel %vm859, %v808, %v801
    %vm861 = vcmask 1042434
    %v862 = vsel %vm861, %v815, %v860
    %vm863 = vcmask 1043459
    %v864 = vsel %vm863, %v822, %v862
    %vm865 = vcmask 1044484
    %v866 = vsel %vm865, %v829, %v864
    %vm867 = vcmask 1045509
    %v868 = vsel %vm867, %v836, %v866
    %vm869 = vcmask 1046534
    %v870 = vsel %vm869, %v843, %v868
    %vm871 = vcmask 1047559
    %v872 = vsel %vm871, %v850, %v870
    %874 = vst.msk [vmem:[#allocation2] sm:$0xff] %vm319, %v872
    // Predicated region
    $region38: #{tpu_custom_call.1} parent=1 // pred_check
      _
    $region39: #{tpu_custom_call.1} parent=1 // pred_check_branch
      %876 = sbr.rel (0) target = $region41
    $region40: #{tpu_custom_call.1} parent=1 // pred_region
      %s878 = ssub.s32 128, 128
      %879 = vsyncadd [#allocation3], %s878
      %s881 = sshll.u32 [#allocation2], 4
      %s882 = int_to_ptr.vmem [resolvable:$true] %s881
      %884 = dma.vmem_to_hbm [thread:$0]  %s882, 128, %s9, [#allocation3]
    $region41: #{tpu_custom_call.1} parent=1 // pred_fallthru
      _
    // Predicated region
    $region42: #{tpu_custom_call.1} parent=1 // pred_check
      _
    $region43: #{tpu_custom_call.1} parent=1 // pred_check_branch
      %886 = sbr.rel (0) target = $region45
    $region44: #{tpu_custom_call.1} parent=1 // pred_region
      %887 = dma.done [#allocation3], 128
    $region45: #{tpu_custom_call.1} parent=1 // pred_fallthru
      _
    %888 = vsyncpa [#allocation3], 1

</llo_original>
